<compile_context>
chip_gen: v5e
topology: v5e:2x2
jax: 0.10.0
libtpu: 0.0.40
codegen_flags: <defaults>
</compile_context>

<pallas_src>
import jax
import jax.numpy as jnp
import numpy as np
from jax.experimental import pallas as pl
from jax.experimental.pallas import tpu as pltpu

# Small shapes consistent with the module (char-level vocab, tiny context).
BATCH = 2
SEQ = 8                        # T  (fixed; see TODO below for variable T)
N_EMBD = 128                   # C  (only appears in host-side folding)
VOCAB = 65                     # len(chars), e.g. char-level Shakespeare
BLOCK_SIZE = 64                # position-embedding table rows (>= SEQ)

BT = BATCH * SEQ               # 16 flat rows -> two f32 sublane tiles
VOCAB_PAD = 128                # pad logits dim to one full lane tile
ROW_BLOCK = min(BT, 256)       # rows per grid step (256 amortizes MXU at scale)
assert BT % ROW_BLOCK == 0
NEG_PAD = -1e30                # padded-lane bias so softmax on 128 lanes is safe


def bigram_kernel(idx_ref, tw_ref, pb_ref, out_ref):
    # idx_ref: (ROW_BLOCK, 1) i32      tw_ref: (VOCAB_PAD, VOCAB_PAD) bf16
    # pb_ref:  (ROW_BLOCK, VOCAB_PAD) f32    out_ref: (ROW_BLOCK, VOCAB_PAD) f32
    idx = idx_ref[...]                                               # (R, 1)

    # Embedding gather + lm_head fused into ONE MXU matmul via one-hot rows.
    vocab_iota = jax.lax.broadcasted_iota(jnp.int32, (ROW_BLOCK, VOCAB_PAD), 1)
    onehot = (idx == vocab_iota).astype(jnp.bfloat16)                # exact 0/1

    logits = jnp.dot(onehot, tw_ref[...],
                     preferred_element_type=jnp.float32)             # (R, 128)
    # PB already contains pos_emb @ W + b (and -1e30 on padded lanes).
    out_ref[...] = logits + pb_ref[...]
    # TODO(synk): cross-entropy loss (targets != None) and generate()'s
    # multinomial sampling loop are host/JAX-side control flow, not kernel ops.


def bigram_forward(idx, folded_params):
    """idx: (B, T) int32 token ids. Returns logits (B, T, VOCAB) float32."""
    tw_bf16, pb_f32 = folded_params
    idx2d = idx.reshape(BT, 1).astype(jnp.int32)

    bytes_accessed = (BT * 4                      # idx
                      + VOCAB_PAD * VOCAB_PAD * 2 # TW (bf16)
                      + BT * VOCAB_PAD * 4        # PB
                      + BT * VOCAB_PAD * 4)       # out
    cost = pl.CostEstimate(flops=2 * BT * VOCAB_PAD * VOCAB_PAD,
                           transcendentals=0,
                           bytes_accessed=bytes_accessed)

    out_pad = pl.pallas_call(
        bigram_kernel,
        out_shape=jax.ShapeDtypeStruct((BT, VOCAB_PAD), jnp.float32),
        grid_spec=pltpu.PrefetchScalarGridSpec(
            num_scalar_prefetch=0,
            grid=(BT // ROW_BLOCK,),              # row blocks (1 step at BT=16)
            in_specs=[
                pl.BlockSpec((ROW_BLOCK, 1), lambda i: (i, 0)),            # idx
                pl.BlockSpec((VOCAB_PAD, VOCAB_PAD), lambda i: (0, 0)),    # TW
                pl.BlockSpec((ROW_BLOCK, VOCAB_PAD), lambda i: (i, 0)),    # PB
            ],
            out_specs=pl.BlockSpec((ROW_BLOCK, VOCAB_PAD), lambda i: (i, 0)),
        ),
        compiler_params=pltpu.CompilerParams(
            dimension_semantics=("parallel",)),   # shards across v7x's 2 TCs
        cost_estimate=cost,
    )(idx2d, tw_bf16, pb_f32)

    # Padded lanes carry -1e30 so out_pad is softmax-safe as-is; slice only to
    # match the PyTorch forward signature (layout plumbing, not compute).
    return out_pad.reshape(BATCH, SEQ, VOCAB_PAD)[..., :VOCAB]


def init_params(key):
    k1, k2, k3, k4 = jax.random.split(key, 4)
    s = 0.02
    tok_table = s * jax.random.normal(k1, (VOCAB, N_EMBD), jnp.float32)
    pos_table = s * jax.random.normal(k2, (BLOCK_SIZE, N_EMBD), jnp.float32)
    # lm_head stored (in, out) so forward is x @ W (== PyTorch x @ W.T + b).
    w_head = s * jax.random.normal(k3, (N_EMBD, VOCAB), jnp.float32)
    b_head = s * jax.random.normal(k4, (VOCAB,), jnp.float32)
    return tok_table, pos_table, w_head, b_head


def fold_params(params):
    """One-time host-side fold of the constant weight chain into TW / PB."""
    tok_table, pos_table, w_head, b_head = params
    hi = jax.lax.Precision.HIGHEST

    # TW[v] = tok_table[v] @ W_head, zero-padded to a 128x128 lane tile, bf16.
    tw = jnp.dot(tok_table, w_head, precision=hi)              # (VOCAB, VOCAB)
    tw_pad = jnp.zeros((VOCAB_PAD, VOCAB_PAD), jnp.float32)
    tw_pad = tw_pad.at[:VOCAB, :VOCAB].set(tw)
    tw_bf16 = tw_pad.astype(jnp.bfloat16)

    # PB[t] = pos_table[t] @ W_head + b_head, padded lanes -> -1e30,
    # pre-tiled across the batch (flat rows are batch-major) -> (BT, 128) f32.
    pb = jnp.dot(pos_table[:SEQ], w_head, precision=hi) + b_head   # (T, VOCAB)
    pb_pad = jnp.full((SEQ, VOCAB_PAD), NEG_PAD, jnp.float32)
    pb_pad = pb_pad.at[:, :VOCAB].set(pb)
    pb_bt = jnp.tile(pb_pad, (BATCH, 1))                           # (BT, 128)
    return tw_bf16, pb_bt
    # TODO(synk): SEQ/T is compile-time fixed here; generate()'s variable-T
    # prompts would need per-T PB slabs or masked position rows.


def bigram_reference(idx, params):
    """Pure-JAX reference mirroring the PyTorch forward (targets=None)."""
    tok_table, pos_table, w_head, b_head = params
    T = idx.shape[1]
    tok = tok_table[idx]                              # (B, T, C)
    pos = pos_table[:T]                               # (T, C)
    x = tok + pos
    return jnp.dot(x, w_head,
                   precision=jax.lax.Precision.HIGHEST) + b_head   # (B, T, vocab)


if __name__ == "__main__":
    key = jax.random.PRNGKey(0)
    k_idx, k_p = jax.random.split(key)
    idx = jax.random.randint(k_idx, (BATCH, SEQ), 0, VOCAB, jnp.int32)
    params = init_params(k_p)

    logits = jax.block_until_ready(bigram_forward(idx, fold_params(params)))
    ref = jax.block_until_ready(bigram_reference(idx, params))
    # TW is carried in bf16 (exact one-hot selection, bf16-rounded table):
    # absolute error bound ~3e-5 at weight scale 0.02, well inside atol.
    np.testing.assert_allclose(np.asarray(logits), np.asarray(ref),
                               rtol=1e-3, atol=2e-4)
    print("KERNEL_OK")
</pallas_src>

<mosaic_0001>
module attributes {stable_mosaic.version = 11 : i64} {
  func.func @bigram_kernel(%arg0: i32, %arg1: memref<16x1xi32, #tpu.memory_space<vmem>>, %arg2: memref<128x128xbf16, #tpu.memory_space<vmem>>, %arg3: memref<16x128xf32, #tpu.memory_space<vmem>>, %arg4: memref<16x128xf32, #tpu.memory_space<vmem>>) attributes {dimension_semantics = [#tpu.dimension_semantics<parallel>], iteration_bounds = array<i64: 1>, scalar_prefetch = 0 : i64, scratch_operands = 0 : i64, tpu.core_type = #tpu.core_type<tc>, window_params = [{transform_indices = @transform_0, window_bounds = array<i64: 16, 1>}, {pipeline_mode = #tpu.pipeline_mode<synchronous>, transform_indices = @transform_1, window_bounds = array<i64: 128, 128>}, {transform_indices = @transform_2, window_bounds = array<i64: 16, 128>}, {transform_indices = @transform_3, window_bounds = array<i64: 16, 128>}]} {
    %c0 = arith.constant 0 : index
    %c0_0 = arith.constant 0 : index
    %0 = vector.load %arg1[%c0, %c0_0] : memref<16x1xi32, #tpu.memory_space<vmem>>, vector<16x1xi32>
    %1 = tpu.iota {dimensions = array<i32: 1>} : vector<16x128xi32>
    %2 = vector.broadcast %0 : vector<16x1xi32> to vector<16x128xi32>
    %3 = arith.cmpi eq, %2, %1 : vector<16x128xi32>
    %4 = arith.extui %3 : vector<16x128xi1> to vector<16x128xi32>
    %5 = arith.sitofp %4 : vector<16x128xi32> to vector<16x128xf32>
    %6 = arith.truncf %5 : vector<16x128xf32> to vector<16x128xbf16>
    %c0_1 = arith.constant 0 : index
    %c0_2 = arith.constant 0 : index
    %7 = vector.load %arg2[%c0_1, %c0_2] : memref<128x128xbf16, #tpu.memory_space<vmem>>, vector<128x128xbf16>
    %cst = arith.constant dense<0.000000e+00> : vector<16x128xf32>
    %8 = tpu.matmul %6, %7, %cst {dimension_numbers = #tpu.dot_dimension_numbers<[1], [0], [0], [1], [0, 0, 1, 1], [], []>} : vector<16x128xbf16>, vector<128x128xbf16>, vector<16x128xf32> -> vector<16x128xf32>
    %c0_3 = arith.constant 0 : index
    %c0_4 = arith.constant 0 : index
    %9 = vector.load %arg3[%c0_3, %c0_4] : memref<16x128xf32, #tpu.memory_space<vmem>>, vector<16x128xf32>
    %10 = arith.addf %8, %9 : vector<16x128xf32>
    %c0_5 = arith.constant 0 : index
    %c0_6 = arith.constant 0 : index
    %11 = vector.load %arg4[%c0_5, %c0_6] : memref<16x128xf32, #tpu.memory_space<vmem>>, vector<16x128xf32>
    tpu.vector_store %arg4[%c0_5, %c0_6], %10 {strides = array<i32>} : memref<16x128xf32, #tpu.memory_space<vmem>>, vector<16x128xf32>,
    return
  }
  func.func @transform_0(%arg0: i32) -> (i32, i32) {
    %c0_i32 = arith.constant 0 : i32
    %c0_i32_0 = arith.constant 0 : i32
    return %arg0, %c0_i32 : i32, i32
  }
  func.func @transform_1(%arg0: i32) -> (i32, i32) {
    %c0_i32 = arith.constant 0 : i32
    %c0_i32_0 = arith.constant 0 : i32
    %c0_i32_1 = arith.constant 0 : i32
    return %c0_i32, %c0_i32_0 : i32, i32
  }
  func.func @transform_2(%arg0: i32) -> (i32, i32) {
    %c0_i32 = arith.constant 0 : i32
    %c0_i32_0 = arith.constant 0 : i32
    return %arg0, %c0_i32 : i32, i32
  }
  func.func @transform_3(%arg0: i32) -> (i32, i32) {
    %c0_i32 = arith.constant 0 : i32
    %c0_i32_0 = arith.constant 0 : i32
    return %arg0, %c0_i32 : i32, i32
  }
}

</mosaic_0001>

<llo_original>
// kernel: tpu_custom_call.1
$region0: #{tpu_custom_call.1}
  #allocation0 [shape = 'u32[]', space=smem, size = 0x4, offset = 0x4, fixed_abs, tag = 'smem constant byte address 0x4 - core index']
  #allocation1 [shape = 'u32[72,128]{1,0:T(1,128)}', space=vmem, size = 0x9000, scoped, tag = 'internal scratch']
  %s0 = inlined_call_operand.vmem [shape: s32[16,1], index: 0, kind: input, shape index: {}]
  %s1 = inlined_call_operand.hbm [shape: bf16[128,128], index: 1, kind: input, shape index: {}]
  %s2 = inlined_call_operand.vmem [shape: f32[16,128], index: 2, kind: input, shape index: {}]
  %s3 = inlined_call_operand.hbm [shape: f32[16,128], index: 3, kind: output, shape index: {}]
  %s4 = sld [smem:[#allocation0]]
  $region26: #{tpu_custom_call.1} parent=0
    _
  %s6 = ssub.s32 1, %s4
  %s7 = scalar_select 0, %s6, %s4
  $region1: #{tpu_custom_call.1} parent=0
    #allocation2 [shape = 'u8[32768]{0}', space=vmem, size = 0x8000, scoped, tag = 'input window, operand 1, single buffered']
    #allocation3 [shape = 's32[1]{0}', space=sflag, size = 0x4, scoped, tag = 'scoped memory for tpu_custom_call.1']
    #allocation4 [shape = 's32[1]{0}', space=sflag, size = 0x4, scoped, tag = 'scoped memory for tpu_custom_call.1']
    #allocation5 [shape = 'u8[8192]{0}', space=vmem, size = 0x2000, scoped, tag = 'output window, operand 0, single buffered']
    %8 = vsyncpa [#allocation3], 0
    %9 = vsyncpa [#allocation4], 0
    // Predicated region
    $region2: #{tpu_custom_call.1} parent=1 // pred_check
      _
    $region3: #{tpu_custom_call.1} parent=1 // pred_check_branch
      %11 = sbr.rel (0) target = $region5
    $region4: #{tpu_custom_call.1} parent=1 // pred_region
      _
    $region5: #{tpu_custom_call.1} parent=1 // pred_fallthru
      _
    // Predicated region
    $region6: #{tpu_custom_call.1} parent=1 // pred_check
      _
    $region7: #{tpu_custom_call.1} parent=1 // pred_check_branch
      %13 = sbr.rel (0) target = $region9
    $region8: #{tpu_custom_call.1} parent=1 // pred_region
      %15 = vsyncadd [#allocation3], 0
      %s16 = sshll.u32 %s1, 4
      %s17 = int_to_ptr.hbm [resolvable:$true] %s16
      %s18 = sshll.u32 [#allocation2], 4
      %s19 = int_to_ptr.vmem [resolvable:$true] %s18
      %24 = dma.hbm_to_vmem [thread:$0]  %s17, 1024, %s19, [#allocation3], 64, 64, 4
    $region9: #{tpu_custom_call.1} parent=1 // pred_fallthru
      _
    // Predicated region
    $region10: #{tpu_custom_call.1} parent=1 // pred_check
      _
    $region11: #{tpu_custom_call.1} parent=1 // pred_check_branch
      %26 = sbr.rel (0) target = $region13
    $region12: #{tpu_custom_call.1} parent=1 // pred_region
      _
    $region13: #{tpu_custom_call.1} parent=1 // pred_fallthru
      _
    // Predicated region
    $region14: #{tpu_custom_call.1} parent=1 // pred_check
      _
    $region15: #{tpu_custom_call.1} parent=1 // pred_check_branch
      %28 = sbr.rel (0) target = $region17
    $region16: #{tpu_custom_call.1} parent=1 // pred_region
      %30 = dma.done [#allocation3], 1024
    $region17: #{tpu_custom_call.1} parent=1 // pred_fallthru
      _
    %v31 = vld [vmem:[%s0] sm:$0xff]
    %v32 = vld [vmem:[%s0 + $0x8] sm:$0xff]
    %v33 = vlaneseq
    %v34 = vand.u32 %v33, 127
    %35 = vset.pattern.permute.xlu0 0
    %36 = vperm.xlu0 %35, %v31
    %v37 = vpop.permute.xlu0 %36
    %38 = vset.pattern.permute.xlu0 0
    %39 = vperm.xlu0 %38, %v32
    %v40 = vpop.permute.xlu0 %39
    %vm41 = vcmp.eq.s32.totalorder %v37, %v34
    %vm42 = vcmp.eq.s32.totalorder %v40, %v34
    %v43 = vsel %vm41, 1, 0
    %v44 = vsel %vm42, 1, 0
    %v45 = vcvt.s32.f32 %v43
    %v46 = vcvt.s32.f32 %v44
    %v47 = vpack.c.bf16 %v46, %v45
    %v48 = vld [vmem:[#allocation2] sm:$0xf]
    %v49 = vld [vmem:[#allocation2 + $0x4] sm:$0xf]
    %v50 = vld [vmem:[#allocation2 + $0x8] sm:$0xf]
    %v51 = vld [vmem:[#allocation2 + $0xc] sm:$0xf]
    %v52 = vld [vmem:[#allocation2 + $0x10] sm:$0xf]
    %v53 = vld [vmem:[#allocation2 + $0x14] sm:$0xf]
    %v54 = vld [vmem:[#allocation2 + $0x18] sm:$0xf]
    %v55 = vld [vmem:[#allocation2 + $0x1c] sm:$0xf]
    %v56 = vld [vmem:[#allocation2 + $0x20] sm:$0xf]
    %v57 = vld [vmem:[#allocation2 + $0x24] sm:$0xf]
    %v58 = vld [vmem:[#allocation2 + $0x28] sm:$0xf]
    %v59 = vld [vmem:[#allocation2 + $0x2c] sm:$0xf]
    %v60 = vld [vmem:[#allocation2 + $0x30] sm:$0xf]
    %v61 = vld [vmem:[#allocation2 + $0x34] sm:$0xf]
    %v62 = vld [vmem:[#allocation2 + $0x38] sm:$0xf]
    %v63 = vld [vmem:[#allocation2 + $0x3c] sm:$0xf]
    %v64 = vld [vmem:[%s2] sm:$0xff]
    %v65 = vld [vmem:[%s2 + $0x8] sm:$0xff]
    %v82 = vunpack.c.l.b16 %v48
    %v83 = vunpack.c.l.b16 %v49
    %v84 = vunpack.c.l.b16 %v50
    %v85 = vunpack.c.l.b16 %v51
    %v86 = vunpack.c.l.b16 %v52
    %v87 = vunpack.c.l.b16 %v53
    %v88 = vunpack.c.l.b16 %v54
    %v89 = vunpack.c.l.b16 %v55
    %v90 = vunpack.c.l.b16 %v56
    %v91 = vunpack.c.l.b16 %v57
    %v92 = vunpack.c.l.b16 %v58
    %v93 = vunpack.c.l.b16 %v59
    %v94 = vunpack.c.l.b16 %v60
    %v95 = vunpack.c.l.b16 %v61
    %v96 = vunpack.c.l.b16 %v62
    %v97 = vunpack.c.l.b16 %v63
    %v98 = vpack.c.b16 %v83, %v82
    %v99 = vpack.c.b16 %v85, %v84
    %v100 = vpack.c.b16 %v87, %v86
    %v101 = vpack.c.b16 %v89, %v88
    %v102 = vpack.c.b16 %v91, %v90
    %v103 = vpack.c.b16 %v93, %v92
    %v104 = vpack.c.b16 %v95, %v94
    %v105 = vpack.c.b16 %v97, %v96
    %114 = vmatpush.bf16.msra.mxu0 %v105
    %115 = vmatpush.bf16.msra.mxu0 %v104
    %116 = vmatpush.bf16.msra.mxu0 %v103
    %117 = vmatpush.bf16.msra.mxu0 %v102
    %118 = vmatpush.bf16.msra.mxu0 %v101
    %119 = vmatpush.bf16.msra.mxu0 %v100
    %120 = vmatpush.bf16.msra.mxu0 %v99
    %121 = vmatpush.bf16.msra.mxu0 %v98
    %122 = vmatmul.bf16.gmra.mxu0 %v47
    %v123 = vpop.f32.mrf.mxu0
    %v124 = vadd.f32 %v64, %v123
    %v125 = vpop.f32.mrf.mxu0
    %v126 = vadd.f32 %v65, %v125
    %127 = vdwg.mxu0
    %128 = vst [vmem:[#allocation5] sm:$0xff] %v124
    %129 = vst [vmem:[#allocation5 + $0x8] sm:$0xff] %v126
    // Predicated region
    $region18: #{tpu_custom_call.1} parent=1 // pred_check
      _
    $region19: #{tpu_custom_call.1} parent=1 // pred_check_branch
      %131 = sbr.rel (0) target = $region21
    $region20: #{tpu_custom_call.1} parent=1 // pred_region
      %133 = vsyncadd [#allocation4], 0
      %s134 = sshll.u32 [#allocation5], 4
      %s135 = int_to_ptr.vmem [resolvable:$true] %s134
      %s136 = sshll.u32 %s3, 4
      %s137 = int_to_ptr.hbm [resolvable:$true] %s136
      %142 = dma.vmem_to_hbm [thread:$0]  %s135, 256, %s137, [#allocation4], 128, 128, 8
    $region21: #{tpu_custom_call.1} parent=1 // pred_fallthru
      _
    // Predicated region
    $region22: #{tpu_custom_call.1} parent=1 // pred_check
      _
    $region23: #{tpu_custom_call.1} parent=1 // pred_check_branch
      %144 = sbr.rel (0) target = $region25
    $region24: #{tpu_custom_call.1} parent=1 // pred_region
      %146 = dma.done [#allocation4], 256
    $region25: #{tpu_custom_call.1} parent=1 // pred_fallthru
      _
    %147 = vsyncpa [#allocation3], 1
    %148 = vsyncpa [#allocation4], 1

</llo_original>
